<compile_context>
chip_gen: v6e
topology: v6e:2x2x1
jax: 0.10.0
libtpu: 0.0.40
codegen_flags: <defaults>
</compile_context>

<pallas_src>
import numpy as np
import jax
import jax.numpy as jnp
from jax.experimental import pallas as pl
from jax.experimental.pallas import tpu as pltpu


def _row_tile(n, candidates=(512, 256, 128, 64, 32, 16, 8)):
    """Largest tile that evenly divides n (falls back to the full extent)."""
    for t in candidates:
        if t <= n and n % t == 0:
            return t
    return n


# ----------------------------- encode kernels ---------------------------------
def _xw_kernel(x_ref, w_ref, o_ref):
    # XW tile = X tile @ W (bf16 MXU operands, f32 accumulation, bf16 result).
    xw = jnp.dot(x_ref[...].astype(jnp.bfloat16),
                 w_ref[...].astype(jnp.bfloat16),
                 preferred_element_type=jnp.float32)
    o_ref[...] = xw.astype(o_ref.dtype)


def _adj_matmul_kernel(adj_ref, xw_ref, z_ref, acc_ref):
    # Z tile = sum_k adj[i, k] @ XW[k]; accumulate in an f32 VMEM scratch.
    @pl.when(pl.program_id(1) == 0)
    def _():
        acc_ref[...] = jnp.zeros_like(acc_ref)

    acc_ref[...] += jnp.dot(adj_ref[...], xw_ref[...],
                            preferred_element_type=jnp.float32)

    @pl.when(pl.program_id(1) == pl.num_programs(1) - 1)
    def _():
        z_ref[...] = acc_ref[...]


def encode(x, w, adj):
    n, d_in = x.shape
    h = w.shape[1]
    tm = _row_tile(n)   # node-row tile (M axis)
    tk = _row_tile(n)   # reduction tile over adj columns (K axis)

    # --- XW = X @ W (tiny; tiled over node rows, bf16 result) ---
    xw = pl.pallas_call(
        _xw_kernel,
        out_shape=jax.ShapeDtypeStruct((n, h), jnp.bfloat16),
        grid_spec=pltpu.PrefetchScalarGridSpec(
            num_scalar_prefetch=0,
            grid=(n // tm,),
            in_specs=[pl.BlockSpec((tm, d_in), lambda i: (i, 0)),
                      pl.BlockSpec((d_in, h), lambda i: (0, 0))],
            out_specs=pl.BlockSpec((tm, h), lambda i: (i, 0)),
        ),
        compiler_params=pltpu.CompilerParams(
            dimension_semantics=("parallel",)),
    )(x, w)

    # --- Z = adj @ XW (bf16 adj stream halves HBM traffic; f32 accumulation) ---
    adj_bf16 = adj.astype(jnp.bfloat16)
    z = pl.pallas_call(
        _adj_matmul_kernel,
        out_shape=jax.ShapeDtypeStruct((n, h), jnp.float32),
        grid_spec=pltpu.PrefetchScalarGridSpec(
            num_scalar_prefetch=0,
            grid=(n // tm, n // tk),
            in_specs=[pl.BlockSpec((tm, tk), lambda i, k: (i, k)),
                      pl.BlockSpec((tk, h), lambda i, k: (k, 0))],
            out_specs=pl.BlockSpec((tm, h), lambda i, k: (i, 0)),
            scratch_shapes=[pltpu.VMEM((tm, h), jnp.float32)],
        ),
        compiler_params=pltpu.CompilerParams(
            dimension_semantics=("parallel", "arbitrary"),
            vmem_limit_bytes=48 * 1024 * 1024),  # leave headroom for v7x (64 MiB VMEM)
    )(adj_bf16, xw)
    return z


# ----------------------------- decode kernel ----------------------------------
def _decode_kernel(zi_ref, zj_ref, w2_ref, out_ref):
    # zi_ref / zj_ref: (H, E_BLK) transposed endpoint blocks; w2_ref: (H, 1).
    prod = zi_ref[...] * zj_ref[...]                              # VPU elementwise
    logit = jnp.sum(prod * w2_ref[...], axis=0, keepdims=True)    # sublane reduce -> (1, E_BLK)
    # sigmoid via EUP exp + approximate reciprocal (both on the EUP slot).
    out_ref[...] = pl.reciprocal(1.0 + jnp.exp(-logit), approx=True)


def decode(z, w2, edges, *, e_blk=128):
    n, h = z.shape
    e = edges.shape[0]
    n_blocks = pl.cdiv(e, e_blk)
    e_pad = n_blocks * e_blk

    # Dense wrapper-side gather of the two endpoint rows (recommended path):
    # indices are assumed in-range; jnp.take clips OOB instead of faulting.
    ei = edges[:, 0].astype(jnp.int32)
    ej = edges[:, 1].astype(jnp.int32)
    zi_t = jnp.take(z, ei, axis=0).T        # (H, E): edge axis on lanes
    zj_t = jnp.take(z, ej, axis=0).T
    pad = e_pad - e
    if pad:
        zi_t = jnp.pad(zi_t, ((0, 0), (0, pad)))
        zj_t = jnp.pad(zj_t, ((0, 0), (0, pad)))

    out = pl.pallas_call(
        _decode_kernel,
        out_shape=jax.ShapeDtypeStruct((n_blocks, e_blk), jnp.float32),
        grid_spec=pltpu.PrefetchScalarGridSpec(
            num_scalar_prefetch=0,
            grid=(n_blocks,),
            in_specs=[pl.BlockSpec((h, e_blk), lambda b: (0, b)),
                      pl.BlockSpec((h, e_blk), lambda b: (0, b)),
                      pl.BlockSpec((h, 1), lambda b: (0, 0))],
            out_specs=pl.BlockSpec((1, e_blk), lambda b: (b, 0)),   # lane-dense output
        ),
        compiler_params=pltpu.CompilerParams(
            dimension_semantics=("parallel",)),
    )(zi_t, zj_t, w2)
    return out.reshape(e_pad, 1)[:e]


# ------------------------------- forward ---------------------------------------
@jax.jit
def lgae_ip_linear_forward(x, adj, w1, w2, train_edges, train_false_edges):
    z = encode(x, w1, adj)
    edges = jnp.concatenate([train_edges, train_false_edges], axis=0)
    return decode(z, w2, edges)


# ------------------------------ param init -------------------------------------
def xavier_uniform(key, fan_in, fan_out):
    limit = float(np.sqrt(6.0 / (fan_in + fan_out)))
    return jax.random.uniform(key, (fan_in, fan_out), jnp.float32, -limit, limit)


if __name__ == "__main__":
    N = 16          # number of nodes
    INPUT_DIM = 8   # args.input_dim
    HIDDEN1 = 32    # args.hidden1_dim

    key = jax.random.PRNGKey(0)
    k_x, k_w1, k_w2 = jax.random.split(key, 3)

    x = jax.random.normal(k_x, (N, INPUT_DIM), dtype=jnp.float32)
    w1 = xavier_uniform(k_w1, INPUT_DIM, HIDDEN1)       # self.weight
    w2 = xavier_uniform(k_w2, HIDDEN1, 1)               # self.weight_two

    # Deterministic edge lists (row = (i, j) node index pair).
    train_edges = np.array([[0, 1], [2, 3], [4, 5], [6, 7]], dtype=np.int32)
    train_false_edges = np.array([[0, 15], [1, 14], [2, 13], [3, 12]], dtype=np.int32)

    # Deterministic row-normalized adjacency (self-loops + symmetric train edges).
    a = np.eye(N, dtype=np.float32)
    for i, j in train_edges:
        a[i, j] = 1.0
        a[j, i] = 1.0
    adj = jnp.asarray(a / a.sum(axis=1, keepdims=True), dtype=jnp.float32)

    te = jnp.asarray(train_edges)
    tfe = jnp.asarray(train_false_edges)

    a_pred = lgae_ip_linear_forward(x, adj, w1, w2, te, tfe)
    a_pred = jax.block_until_ready(a_pred)

    # Pure-JAX f32 reference (kernels use bf16 MXU operands + approx reciprocal,
    # so compare with a tolerance that covers bf16 rounding).
    z_ref = adj @ (x @ w1)
    edges = jnp.concatenate([te, tfe], axis=0)
    prod_ref = z_ref[edges[:, 0]] * z_ref[edges[:, 1]]
    ref = jax.nn.sigmoid(prod_ref @ w2)
    assert a_pred.shape == (edges.shape[0], 1)
    np.testing.assert_allclose(np.asarray(a_pred), np.asarray(ref), rtol=2e-2, atol=2e-2)

    print("KERNEL_OK")
</pallas_src>

<mosaic_0001>
module attributes {stable_mosaic.version = 11 : i64} {
  func.func @_xw_kernel(%arg0: i32, %arg1: memref<16x8xf32, #tpu.memory_space<vmem>>, %arg2: memref<8x32xf32, #tpu.memory_space<vmem>>, %arg3: memref<16x32xbf16, #tpu.memory_space<vmem>>) attributes {dimension_semantics = [#tpu.dimension_semantics<parallel>], iteration_bounds = array<i64: 1>, scalar_prefetch = 0 : i64, scratch_operands = 0 : i64, tpu.core_type = #tpu.core_type<tc>, window_params = [{transform_indices = @transform_0, window_bounds = array<i64: 16, 8>}, {pipeline_mode = #tpu.pipeline_mode<synchronous>, transform_indices = @transform_1, window_bounds = array<i64: 8, 32>}, {transform_indices = @transform_2, window_bounds = array<i64: 16, 32>}]} {
    %c0 = arith.constant 0 : index
    %c0_0 = arith.constant 0 : index
    %0 = vector.load %arg1[%c0, %c0_0] : memref<16x8xf32, #tpu.memory_space<vmem>>, vector<16x8xf32>
    %1 = arith.truncf %0 : vector<16x8xf32> to vector<16x8xbf16>
    %c0_1 = arith.constant 0 : index
    %c0_2 = arith.constant 0 : index
    %2 = vector.load %arg2[%c0_1, %c0_2] : memref<8x32xf32, #tpu.memory_space<vmem>>, vector<8x32xf32>
    %3 = arith.truncf %2 : vector<8x32xf32> to vector<8x32xbf16>
    %cst = arith.constant dense<0.000000e+00> : vector<16x32xf32>
    %4 = tpu.matmul %1, %3, %cst {dimension_numbers = #tpu.dot_dimension_numbers<[1], [0], [0], [1], [0, 0, 1, 1], [], []>} : vector<16x8xbf16>, vector<8x32xbf16>, vector<16x32xf32> -> vector<16x32xf32>
    %5 = arith.truncf %4 : vector<16x32xf32> to vector<16x32xbf16>
    %c0_3 = arith.constant 0 : index
    %c0_4 = arith.constant 0 : index
    %6 = vector.load %arg3[%c0_3, %c0_4] : memref<16x32xbf16, #tpu.memory_space<vmem>>, vector<16x32xbf16>
    tpu.vector_store %arg3[%c0_3, %c0_4], %5 {strides = array<i32>} : memref<16x32xbf16, #tpu.memory_space<vmem>>, vector<16x32xbf16>,
    return
  }
  func.func @transform_0(%arg0: i32) -> (i32, i32) {
    %c0_i32 = arith.constant 0 : i32
    %c0_i32_0 = arith.constant 0 : i32
    return %arg0, %c0_i32 : i32, i32
  }
  func.func @transform_1(%arg0: i32) -> (i32, i32) {
    %c0_i32 = arith.constant 0 : i32
    %c0_i32_0 = arith.constant 0 : i32
    %c0_i32_1 = arith.constant 0 : i32
    return %c0_i32, %c0_i32_0 : i32, i32
  }
  func.func @transform_2(%arg0: i32) -> (i32, i32) {
    %c0_i32 = arith.constant 0 : i32
    %c0_i32_0 = arith.constant 0 : i32
    return %arg0, %c0_i32 : i32, i32
  }
}

module attributes {stable_mosaic.version = 11 : i64} {
  func.func @_adj_matmul_kernel(%arg0: i32, %arg1: i32, %arg2: memref<16x16xbf16, #tpu.memory_space<vmem>>, %arg3: memref<16x32xbf16, #tpu.memory_space<vmem>>, %arg4: memref<16x32xf32, #tpu.memory_space<vmem>>, %arg5: memref<16x32xf32, #tpu.memory_space<vmem>>) attributes {dimension_semantics = [#tpu.dimension_semantics<parallel>, #tpu.dimension_semantics<arbitrary>], iteration_bounds = array<i64: 1, 1>, scalar_prefetch = 0 : i64, scratch_operands = 1 : i64, tpu.core_type = #tpu.core_type<tc>, window_params = [{transform_indices = @transform_0, window_bounds = array<i64: 16, 16>}, {transform_indices = @transform_1, window_bounds = array<i64: 16, 32>}, {transform_indices = @transform_2, window_bounds = array<i64: 16, 32>}]} {
    %c0_i32 = arith.constant 0 : i32
    %0 = arith.cmpi eq, %arg1, %c0_i32 : i32
    %1 = arith.extui %0 : i1 to i32
    %c0_i32_0 = arith.constant 0 : i32
    %2 = arith.cmpi ne, %1, %c0_i32_0 : i32
    scf.if %2 {
      %cst_10 = arith.constant 0.000000e+00 : f32
      %12 = vector.broadcast %cst_10 : f32 to vector<16x32xf32>
      %c0_11 = arith.constant 0 : index
      %c0_12 = arith.constant 0 : index
      %13 = vector.load %arg5[%c0_11, %c0_12] : memref<16x32xf32, #tpu.memory_space<vmem>>, vector<16x32xf32>
      tpu.vector_store %arg5[%c0_11, %c0_12], %12 {strides = array<i32>} : memref<16x32xf32, #tpu.memory_space<vmem>>, vector<16x32xf32>,
    } else {
    }
    %c0 = arith.constant 0 : index
    %c0_1 = arith.constant 0 : index
    %3 = vector.load %arg5[%c0, %c0_1] : memref<16x32xf32, #tpu.memory_space<vmem>>, vector<16x32xf32>
    %c0_2 = arith.constant 0 : index
    %c0_3 = arith.constant 0 : index
    %4 = vector.load %arg2[%c0_2, %c0_3] : memref<16x16xbf16, #tpu.memory_space<vmem>>, vector<16x16xbf16>
    %c0_4 = arith.constant 0 : index
    %c0_5 = arith.constant 0 : index
    %5 = vector.load %arg3[%c0_4, %c0_5] : memref<16x32xbf16, #tpu.memory_space<vmem>>, vector<16x32xbf16>
    %cst = arith.constant dense<0.000000e+00> : vector<16x32xf32>
    %6 = tpu.matmul %4, %5, %cst {dimension_numbers = #tpu.dot_dimension_numbers<[1], [0], [0], [1], [0, 0, 1, 1], [], []>} : vector<16x16xbf16>, vector<16x32xbf16>, vector<16x32xf32> -> vector<16x32xf32>
    %7 = arith.addf %3, %6 : vector<16x32xf32>
    %c0_6 = arith.constant 0 : index
    %c0_7 = arith.constant 0 : index
    %8 = vector.load %arg5[%c0_6, %c0_7] : memref<16x32xf32, #tpu.memory_space<vmem>>, vector<16x32xf32>
    tpu.vector_store %arg5[%c0_6, %c0_7], %7 {strides = array<i32>} : memref<16x32xf32, #tpu.memory_space<vmem>>, vector<16x32xf32>,
    %c0_i32_8 = arith.constant 0 : i32
    %9 = arith.cmpi eq, %arg1, %c0_i32_8 : i32
    %10 = arith.extui %9 : i1 to i32
    %c0_i32_9 = arith.constant 0 : i32
    %11 = arith.cmpi ne, %10, %c0_i32_9 : i32
    scf.if %11 {
      %c0_10 = arith.constant 0 : index
      %c0_11 = arith.constant 0 : index
      %12 = vector.load %arg5[%c0_10, %c0_11] : memref<16x32xf32, #tpu.memory_space<vmem>>, vector<16x32xf32>
      %c0_12 = arith.constant 0 : index
      %c0_13 = arith.constant 0 : index
      %13 = vector.load %arg4[%c0_12, %c0_13] : memref<16x32xf32, #tpu.memory_space<vmem>>, vector<16x32xf32>
      tpu.vector_store %arg4[%c0_12, %c0_13], %12 {strides = array<i32>} : memref<16x32xf32, #tpu.memory_space<vmem>>, vector<16x32xf32>,
    } else {
    }
    return
  }
  func.func @transform_0(%arg0: i32, %arg1: i32) -> (i32, i32) {
    %c0_i32 = arith.constant 0 : i32
    return %arg0, %arg1 : i32, i32
  }
  func.func @transform_1(%arg0: i32, %arg1: i32) -> (i32, i32) {
    %c0_i32 = arith.constant 0 : i32
    %c0_i32_0 = arith.constant 0 : i32
    return %arg1, %c0_i32 : i32, i32
  }
  func.func @transform_2(%arg0: i32, %arg1: i32) -> (i32, i32) {
    %c0_i32 = arith.constant 0 : i32
    %c0_i32_0 = arith.constant 0 : i32
    return %arg0, %c0_i32 : i32, i32
  }
}

module attributes {stable_mosaic.version = 11 : i64} {
  func.func @_decode_kernel(%arg0: i32, %arg1: memref<32x128xf32, #tpu.memory_space<vmem>>, %arg2: memref<32x128xf32, #tpu.memory_space<vmem>>, %arg3: memref<32x1xf32, #tpu.memory_space<vmem>>, %arg4: memref<1x128xf32, #tpu.memory_space<vmem>>) attributes {dimension_semantics = [#tpu.dimension_semantics<parallel>], iteration_bounds = array<i64: 1>, scalar_prefetch = 0 : i64, scratch_operands = 0 : i64, tpu.core_type = #tpu.core_type<tc>, window_params = [{transform_indices = @transform_0, window_bounds = array<i64: 32, 128>}, {transform_indices = @transform_1, window_bounds = array<i64: 32, 128>}, {pipeline_mode = #tpu.pipeline_mode<synchronous>, transform_indices = @transform_2, window_bounds = array<i64: 32, 1>}, {transform_indices = @transform_3, window_bounds = array<i64: 1, 128>}]} {
    %c0 = arith.constant 0 : index
    %c0_0 = arith.constant 0 : index
    %0 = vector.load %arg1[%c0, %c0_0] : memref<32x128xf32, #tpu.memory_space<vmem>>, vector<32x128xf32>
    %c0_1 = arith.constant 0 : index
    %c0_2 = arith.constant 0 : index
    %1 = vector.load %arg2[%c0_1, %c0_2] : memref<32x128xf32, #tpu.memory_space<vmem>>, vector<32x128xf32>
    %2 = arith.mulf %0, %1 : vector<32x128xf32>
    %c0_3 = arith.constant 0 : index
    %c0_4 = arith.constant 0 : index
    %3 = vector.load %arg3[%c0_3, %c0_4] : memref<32x1xf32, #tpu.memory_space<vmem>>, vector<32x1xf32>
    %4 = vector.broadcast %3 : vector<32x1xf32> to vector<32x128xf32>
    %5 = arith.mulf %2, %4 : vector<32x128xf32>
    %cst = arith.constant dense<0.000000e+00> : vector<128xf32>
    %6 = vector.multi_reduction <add>, %5, %cst [0] : vector<32x128xf32> to vector<128xf32>
    %7 = vector.shape_cast %6 : vector<128xf32> to vector<1x128xf32>
    %cst_5 = arith.constant 0.000000e+00 : f32
    %8 = vector.broadcast %cst_5 : f32 to vector<1x128xf32>
    %9 = arith.subf %8, %7 : vector<1x128xf32>
    %10 = math.exp %9 : vector<1x128xf32>
    %cst_6 = arith.constant 1.000000e+00 : f32
    %11 = vector.broadcast %cst_6 : f32 to vector<1x128xf32>
    %12 = arith.addf %11, %10 : vector<1x128xf32>
    %13 = tpu.reciprocal %12 {approx = true} : vector<1x128xf32> -> vector<1x128xf32>
    %c0_7 = arith.constant 0 : index
    %c0_8 = arith.constant 0 : index
    %14 = vector.load %arg4[%c0_7, %c0_8] : memref<1x128xf32, #tpu.memory_space<vmem>>, vector<1x128xf32>
    tpu.vector_store %arg4[%c0_7, %c0_8], %13 {strides = array<i32>} : memref<1x128xf32, #tpu.memory_space<vmem>>, vector<1x128xf32>,
    return
  }
  func.func @transform_0(%arg0: i32) -> (i32, i32) {
    %c0_i32 = arith.constant 0 : i32
    %c0_i32_0 = arith.constant 0 : i32
    return %c0_i32, %arg0 : i32, i32
  }
  func.func @transform_1(%arg0: i32) -> (i32, i32) {
    %c0_i32 = arith.constant 0 : i32
    %c0_i32_0 = arith.constant 0 : i32
    return %c0_i32, %arg0 : i32, i32
  }
  func.func @transform_2(%arg0: i32) -> (i32, i32) {
    %c0_i32 = arith.constant 0 : i32
    %c0_i32_0 = arith.constant 0 : i32
    %c0_i32_1 = arith.constant 0 : i32
    return %c0_i32, %c0_i32_0 : i32, i32
  }
  func.func @transform_3(%arg0: i32) -> (i32, i32) {
    %c0_i32 = arith.constant 0 : i32
    %c0_i32_0 = arith.constant 0 : i32
    return %arg0, %c0_i32 : i32, i32
  }
}

</mosaic_0001>

<llo_original>
// kernel: lgae_ip_linear_forward.5
$region0: #{lgae_ip_linear_forward.5}
  #allocation0 [shape = 'u32[]', space=smem, size = 0x4, offset = 0x4, fixed_abs, tag = 'smem constant byte address 0x4 - core index']
  #allocation1 [shape = 'u32[144,128]{1,0:T(1,128)}', space=vmem, size = 0x12000, scoped, tag = 'internal scratch']
  %s0 = inlined_call_operand.vmem [shape: f32[32,128], index: 0, kind: input, shape index: {}]
  %s1 = inlined_call_operand.vmem [shape: f32[32,128], index: 1, kind: input, shape index: {}]
  %s2 = inlined_call_operand.vmem [shape: f32[32,1], index: 2, kind: input, shape index: {}]
  %s3 = inlined_call_operand.vmem [shape: f32[1,128], index: 3, kind: output, shape index: {}]
  %s4 = sld [smem:[#allocation0]]
  $region22: #{lgae_ip_linear_forward.5} parent=0
    _
  %s6 = ssub.s32 1, %s4
  %s7 = scalar_select 0, %s6, %s4
  // Predicated region
  $region2: #{lgae_ip_linear_forward.5} parent=0 // pred_check
    _
  $region3: #{lgae_ip_linear_forward.5} parent=0 // pred_check_branch
    %9 = sbr.rel (0) target = $region5
  $region4: #{lgae_ip_linear_forward.5} parent=0 // pred_region
    _
  $region5: #{lgae_ip_linear_forward.5} parent=0 // pred_fallthru
    _
  // Predicated region
  $region6: #{lgae_ip_linear_forward.5} parent=0 // pred_check
    _
  $region7: #{lgae_ip_linear_forward.5} parent=0 // pred_check_branch
    %11 = sbr.rel (0) target = $region9
  $region8: #{lgae_ip_linear_forward.5} parent=0 // pred_region
    _
  $region9: #{lgae_ip_linear_forward.5} parent=0 // pred_fallthru
    _
  // Predicated region
  $region10: #{lgae_ip_linear_forward.5} parent=0 // pred_check
    _
  $region11: #{lgae_ip_linear_forward.5} parent=0 // pred_check_branch
    %13 = sbr.rel (0) target = $region13
  $region12: #{lgae_ip_linear_forward.5} parent=0 // pred_region
    _
  $region13: #{lgae_ip_linear_forward.5} parent=0 // pred_fallthru
    _
  %v14 = vld [vmem:[%s0] sm:$0xff]
  %v15 = vld [vmem:[%s0 + $0x8] sm:$0xff]
  %v16 = vld [vmem:[%s0 + $0x10] sm:$0xff]
  %v17 = vld [vmem:[%s0 + $0x18] sm:$0xff]
  %v18 = vld [vmem:[%s1] sm:$0xff]
  %v19 = vld [vmem:[%s1 + $0x8] sm:$0xff]
  %v20 = vld [vmem:[%s1 + $0x10] sm:$0xff]
  %v21 = vld [vmem:[%s1 + $0x18] sm:$0xff]
  %v22 = vmul.f32 %v14, %v18
  %v23 = vmul.f32 %v15, %v19
  %v24 = vmul.f32 %v16, %v20
  %v25 = vmul.f32 %v17, %v21
  %v26 = vld [vmem:[%s2] sm:$0xff]
  %v27 = vld [vmem:[%s2 + $0x8] sm:$0xff]
  %v28 = vld [vmem:[%s2 + $0x10] sm:$0xff]
  %v29 = vld [vmem:[%s2 + $0x18] sm:$0xff]
  %31 = vset.pattern.permute.xlu0 0
  %32 = vperm.xlu0 %31, %v26
  %v33 = vpop.permute.xlu0 %32
  %36 = vset.pattern.permute.xlu0 0
  %37 = vperm.xlu0 %36, %v27
  %v38 = vpop.permute.xlu0 %37
  %41 = vset.pattern.permute.xlu0 0
  %42 = vperm.xlu0 %41, %v28
  %v43 = vpop.permute.xlu0 %42
  %46 = vset.pattern.permute.xlu0 0
  %47 = vperm.xlu0 %46, %v29
  %v48 = vpop.permute.xlu0 %47
  %v50 = vmul.f32 %v22, %v33
  %v51 = vmul.f32 %v23, %v38
  %v52 = vmul.f32 %v24, %v43
  %v53 = vmul.f32 %v25, %v48
  %v54 = vadd.f32 %v50, %v51
  %v55 = vadd.f32 %v54, %v52
  %v56 = vadd.f32 %v55, %v53
  %v57 = vrot.slane %v56, 4
  %v58 = vadd.f32 %v56, %v57
  %v59 = vrot.slane %v58, 2
  %v60 = vadd.f32 %v58, %v59
  %v61 = vrot.slane %v60, 1
  %v62 = vadd.f32 %v60, %v61
  %v63 = vsub.f32 0.0, %v62
  %v64 = vmul.f32 %v63, 1.442695
  %v65 = vpow.pop %v64
  %v66 = vadd.f32 %v65, 1.0
  %v67 = vrcp.pop %v66
  %68 = vst [vmem:[%s3] sm:$0x1] %v67
  // Predicated region
  $region14: #{lgae_ip_linear_forward.5} parent=0 // pred_check
    _
  $region15: #{lgae_ip_linear_forward.5} parent=0 // pred_check_branch
    %70 = sbr.rel (0) target = $region17
  $region16: #{lgae_ip_linear_forward.5} parent=0 // pred_region
    _
  $region17: #{lgae_ip_linear_forward.5} parent=0 // pred_fallthru
    _
  // Predicated region
  $region18: #{lgae_ip_linear_forward.5} parent=0 // pred_check
    _
  $region19: #{lgae_ip_linear_forward.5} parent=0 // pred_check_branch
    %72 = sbr.rel (0) target = $region21
  $region20: #{lgae_ip_linear_forward.5} parent=0 // pred_region
    _
  $region21: #{lgae_ip_linear_forward.5} parent=0 // pred_fallthru
    _

// kernel: lgae_ip_linear_forward.3
$region0: #{lgae_ip_linear_forward.3}
  #allocation0 [shape = 'u32[]', space=smem, size = 0x4, offset = 0x4, fixed_abs, tag = 'smem constant byte address 0x4 - core index']
  #allocation1 [shape = 'u32[144,128]{1,0:T(1,128)}', space=vmem, size = 0x12000, scoped, tag = 'internal scratch']
  %s0 = inlined_call_operand.vmem [shape: f32[16,8], index: 0, kind: input, shape index: {}]
  %s1 = inlined_call_operand.vmem [shape: f32[8,32], index: 1, kind: input, shape index: {}]
  %s2 = inlined_call_operand.vmem [shape: bf16[16,32], index: 2, kind: output, shape index: {}]
  %s3 = sld [smem:[#allocation0]]
  $region18: #{lgae_ip_linear_forward.3} parent=0
    _
  %s5 = ssub.s32 1, %s3
  %s6 = scalar_select 0, %s5, %s3
  // Predicated region
  $region2: #{lgae_ip_linear_forward.3} parent=0 // pred_check
    _
  $region3: #{lgae_ip_linear_forward.3} parent=0 // pred_check_branch
    %8 = sbr.rel (0) target = $region5
  $region4: #{lgae_ip_linear_forward.3} parent=0 // pred_region
    _
  $region5: #{lgae_ip_linear_forward.3} parent=0 // pred_fallthru
    _
  // Predicated region
  $region6: #{lgae_ip_linear_forward.3} parent=0 // pred_check
    _
  $region7: #{lgae_ip_linear_forward.3} parent=0 // pred_check_branch
    %10 = sbr.rel (0) target = $region9
  $region8: #{lgae_ip_linear_forward.3} parent=0 // pred_region
    _
  $region9: #{lgae_ip_linear_forward.3} parent=0 // pred_fallthru
    _
  %v12 = vld [vmem:[%s0] sm:$0xff]
  %v13 = vld [vmem:[%s0 + $0x8] sm:$0xff]
  %v14 = vpack.c.bf16 %v13, %v12
  %v15 = vld [vmem:[%s1] sm:$0xff]
  %v16 = vpack.c.bf16 %v15, %v15
  %vm17 = vcmask 64512
  %v19 = vsel %vm17, %v14, 0
  %vm21 = vcmask 1043456
  %v23 = vsel %vm21, %v16, 0
  %25 = vmatprep.subr.bf16.mxu0 0
  %26 = vmatpush1.bf16.msra.mxu0 0
  %27 = vmatprep.subr.bf16.mxu0 0
  %28 = vmatpush1.bf16.msra.mxu0 0
  %29 = vmatprep.subr.bf16.mxu0 0
  %30 = vmatpush1.bf16.msra.mxu0 0
  %31 = vmatprep.subr.bf16.mxu0 0
  %32 = vmatpush1.bf16.msra.mxu0 0
  %33 = vmatprep.subr.bf16.mxu0 0
  %34 = vmatpush1.bf16.msra.mxu0 0
  %35 = vmatprep.subr.bf16.mxu0 0
  %36 = vmatpush1.bf16.msra.mxu0 0
  %37 = vmatprep.subr.bf16.mxu0 0
  %38 = vmatpush1.bf16.msra.mxu0 0
  %39 = vmatprep.subr.bf16.mxu0 0
  %40 = vmatpush1.bf16.msra.mxu0 %v23
  %41 = vmatprep.subr.bf16.mxu0 0
  %42 = vmatpush2.bf16.msra.mxu0 0
  %43 = vmatprep.subr.bf16.mxu0 0
  %44 = vmatpush2.bf16.msra.mxu0 0
  %45 = vmatprep.subr.bf16.mxu0 0
  %46 = vmatpush2.bf16.msra.mxu0 0
  %47 = vmatprep.subr.bf16.mxu0 0
  %48 = vmatpush2.bf16.msra.mxu0 0
  %49 = vmatprep.subr.bf16.mxu0 0
  %50 = vmatpush2.bf16.msra.mxu0 0
  %51 = vmatprep.subr.bf16.mxu0 0
  %52 = vmatpush2.bf16.msra.mxu0 0
  %53 = vmatprep.subr.bf16.mxu0 0
  %54 = vmatpush2.bf16.msra.mxu0 0
  %55 = vmatprep.subr.bf16.mxu0 0
  %56 = vmatpush2.bf16.msra.mxu0 0
  %57 = vmatprep.mubr.bf16.mxu0 0
  %58 = vmatmul.mubr.bf16.gmra.mxu0 %v19
  %v59 = vpop.f32.mrf.mxu0
  %v60 = vadd.f32 0.0, %v59
  %v61 = vpop.f32.mrf.mxu0
  %v62 = vpop.f32.mrf.mxu0
  %v63 = vadd.f32 0.0, %v62
  %v64 = vpop.f32.mrf.mxu0
  %65 = vdwg.mxu0
  %v66 = vpack.c.bf16 %v63, %v60
  %v68 = vunpack.c.l.b16 %v66
  %v69 = vunpack.c.h.b16 %v66
  %v70 = vpack.c.b16 %v68, %v68
  %v71 = vpack.c.b16 %v69, %v69
  %vm74 = vcmask 257024
  %75 = vst.msk [vmem:[%s2] sm:$0xf] %vm74, %v70
  %76 = vst.msk [vmem:[%s2 + $0x4] sm:$0xf] %vm74, %v71
  // Predicated region
  $region10: #{lgae_ip_linear_forward.3} parent=0 // pred_check
    _
  $region11: #{lgae_ip_linear_forward.3} parent=0 // pred_check_branch
    %78 = sbr.rel (0) target = $region13
  $region12: #{lgae_ip_linear_forward.3} parent=0 // pred_region
    _
  $region13: #{lgae_ip_linear_forward.3} parent=0 // pred_fallthru
    _
  // Predicated region
  $region14: #{lgae_ip_linear_forward.3} parent=0 // pred_check
    _
  $region15: #{lgae_ip_linear_forward.3} parent=0 // pred_check_branch
    %80 = sbr.rel (0) target = $region17
  $region16: #{lgae_ip_linear_forward.3} parent=0 // pred_region
    _
  $region17: #{lgae_ip_linear_forward.3} parent=0 // pred_fallthru
    _

// kernel: lgae_ip_linear_forward.4
$region0: #{lgae_ip_linear_forward.4}
  #allocation0 [shape = 'u32[]', space=smem, size = 0x4, offset = 0x4, fixed_abs, tag = 'smem constant byte address 0x4 - core index']
  #allocation1 [shape = 'u32[144,128]{1,0:T(1,128)}', space=vmem, size = 0x12000, scoped, tag = 'internal scratch']
  #allocation2 [shape = 'f32[16,32]{1,0:T(8,128)}', space=vmem, size = 0x2000, scoped, tag = 'scratch operand']
  %s0 = inlined_call_operand.vmem [shape: bf16[16,16], index: 0, kind: input, shape index: {}]
  %s1 = inlined_call_operand.vmem [shape: bf16[16,32], index: 1, kind: input, shape index: {}]
  %s2 = inlined_call_operand.vmem [shape: f32[16,32], index: 2, kind: output, shape index: {}]
  %s3 = sld [smem:[#allocation0]]
  $region26: #{lgae_ip_linear_forward.4} parent=0
    _
  %s5 = ssub.s32 1, %s3
  %s6 = scalar_select 0, %s5, %s3
  // Predicated region
  $region2: #{lgae_ip_linear_forward.4} parent=0 // pred_check
    _
  $region3: #{lgae_ip_linear_forward.4} parent=0 // pred_check_branch
    %8 = sbr.rel (0) target = $region5
  $region4: #{lgae_ip_linear_forward.4} parent=0 // pred_region
    _
  $region5: #{lgae_ip_linear_forward.4} parent=0 // pred_fallthru
    _
  // Predicated region
  $region6: #{lgae_ip_linear_forward.4} parent=0 // pred_check
    _
  $region7: #{lgae_ip_linear_forward.4} parent=0 // pred_check_branch
    %10 = sbr.rel (0) target = $region9
  $region8: #{lgae_ip_linear_forward.4} parent=0 // pred_region
    _
  $region9: #{lgae_ip_linear_forward.4} parent=0 // pred_fallthru
    _
  %p12 = scmp.eq.s32.totalorder 0, 0
  // Predicated region
  $region10: #{lgae_ip_linear_forward.4} parent=0 // pred_check
    %p13 = pneg %p12
  $region11: #{lgae_ip_linear_forward.4} parent=0 // pred_check_branch
    %15 = sbr.rel (%p13) target = $region13
  $region12: #{lgae_ip_linear_forward.4} parent=0 // pred_region
    %vm16 = vcmask 261120
    %17 = vst.msk [vmem:[#allocation2] sm:$0xff] %vm16, 0.0
    %18 = vst.msk [vmem:[#allocation2 + $0x8] sm:$0xff] %vm16, 0.0
  $region13: #{lgae_ip_linear_forward.4} parent=0 // pred_fallthru
    _
  %v19 = vld [vmem:[#allocation2] sm:$0xff]
  %v20 = vld [vmem:[#allocation2 + $0x8] sm:$0xff]
  %v21 = vld [vmem:[%s0] sm:$0xf]
  %v22 = vld [vmem:[%s0 + $0x4] sm:$0xf]
  %v23 = vld [vmem:[%s1] sm:$0xf]
  %v24 = vld [vmem:[%s1 + $0x4] sm:$0xf]
  %v27 = vunpack.c.l.b16 %v21
  %v28 = vunpack.c.l.b16 %v22
  %v29 = vpack.c.b16 %v28, %v27
  %v32 = vunpack.c.l.b16 %v23
  %v33 = vunpack.c.l.b16 %v24
  %v34 = vpack.c.b16 %v33, %v32
  %vm36 = vcmask 130048
  %v38 = vsel %vm36, %v29, 0
  %40 = vmatprep.subr.bf16.mxu0 0
  %41 = vmatpush1.bf16.msra.mxu0 0
  %42 = vmatprep.subr.bf16.mxu0 0
  %43 = vmatpush1.bf16.msra.mxu0 0
  %44 = vmatprep.subr.bf16.mxu0 0
  %45 = vmatpush1.bf16.msra.mxu0 0
  %46 = vmatprep.subr.bf16.mxu0 0
  %47 = vmatpush1.bf16.msra.mxu0 0
  %48 = vmatprep.subr.bf16.mxu0 0
  %49 = vmatpush1.bf16.msra.mxu0 0
  %50 = vmatprep.subr.bf16.mxu0 0
  %51 = vmatpush1.bf16.msra.mxu0 0
  %52 = vmatprep.subr.bf16.mxu0 0
  %53 = vmatpush1.bf16.msra.mxu0 0
  %54 = vmatprep.subr.bf16.mxu0 0
  %55 = vmatpush1.bf16.msra.mxu0 %v34
  %56 = vmatprep.subr.bf16.mxu0 0
  %57 = vmatpush2.bf16.msra.mxu0 0
  %58 = vmatprep.subr.bf16.mxu0 0
  %59 = vmatpush2.bf16.msra.mxu0 0
  %60 = vmatprep.subr.bf16.mxu0 0
  %61 = vmatpush2.bf16.msra.mxu0 0
  %62 = vmatprep.subr.bf16.mxu0 0
  %63 = vmatpush2.bf16.msra.mxu0 0
  %64 = vmatprep.subr.bf16.mxu0 0
  %65 = vmatpush2.bf16.msra.mxu0 0
  %66 = vmatprep.subr.bf16.mxu0 0
  %67 = vmatpush2.bf16.msra.mxu0 0
  %68 = vmatprep.subr.bf16.mxu0 0
  %69 = vmatpush2.bf16.msra.mxu0 0
  %70 = vmatprep.subr.bf16.mxu0 0
  %71 = vmatpush2.bf16.msra.mxu0 0
  %72 = vmatprep.mubr.bf16.mxu0 0
  %73 = vmatmul.mubr.bf16.gmra.mxu0 %v38
  %v74 = vpop.f32.mrf.mxu0
  %v75 = vadd.f32 0.0, %v74
  %v76 = vpop.f32.mrf.mxu0
  %v77 = vpop.f32.mrf.mxu0
  %v78 = vadd.f32 0.0, %v77
  %v79 = vpop.f32.mrf.mxu0
  %80 = vdwg.mxu0
  %v81 = vadd.f32 %v19, %v75
  %v82 = vadd.f32 %v20, %v78
  %vm83 = vcmask 261120
  %84 = vst.msk [vmem:[#allocation2] sm:$0xff] %vm83, %v81
  %85 = vst.msk [vmem:[#allocation2 + $0x8] sm:$0xff] %vm83, %v82
  // Predicated region
  $region14: #{lgae_ip_linear_forward.4} parent=0 // pred_check
    %p86 = pneg %p12
  $region15: #{lgae_ip_linear_forward.4} parent=0 // pred_check_branch
    %88 = sbr.rel (%p86) target = $region17
  $region16: #{lgae_ip_linear_forward.4} parent=0 // pred_region
    %v89 = vld [vmem:[#allocation2] sm:$0xff]
    %v90 = vld [vmem:[#allocation2 + $0x8] sm:$0xff]
    %91 = vst.msk [vmem:[%s2] sm:$0xff] %vm83, %v89
    %92 = vst.msk [vmem:[%s2 + $0x8] sm:$0xff] %vm83, %v90
  $region17: #{lgae_ip_linear_forward.4} parent=0 // pred_fallthru
    _
  // Predicated region
  $region18: #{lgae_ip_linear_forward.4} parent=0 // pred_check
    _
  $region19: #{lgae_ip_linear_forward.4} parent=0 // pred_check_branch
    %94 = sbr.rel (0) target = $region21
  $region20: #{lgae_ip_linear_forward.4} parent=0 // pred_region
    _
  $region21: #{lgae_ip_linear_forward.4} parent=0 // pred_fallthru
    _
  // Predicated region
  $region22: #{lgae_ip_linear_forward.4} parent=0 // pred_check
    _
  $region23: #{lgae_ip_linear_forward.4} parent=0 // pred_check_branch
    %96 = sbr.rel (0) target = $region25
  $region24: #{lgae_ip_linear_forward.4} parent=0 // pred_region
    _
  $region25: #{lgae_ip_linear_forward.4} parent=0 // pred_fallthru
    _

</llo_original>
